<compile_context>
chip_gen: v6e
topology: v6e:2x2x1
jax: 0.10.0
libtpu: 0.0.40
codegen_flags: <defaults>
</compile_context>

<pallas_src>
import functools

import jax
import jax.numpy as jnp
from jax.experimental import pallas as pl
from jax.experimental.pallas import tpu as pltpu

_LANE = 128     # lane width of a vreg (last dim)
_SUBLANE = 8    # sublane count of a vreg (second-to-last dim)


def _round_up(x, m):
    return ((x + m - 1) // m) * m


def _pad_to(a, shape):
    pads = tuple((0, t - s) for s, t in zip(a.shape, shape))
    if any(p for _, p in pads):
        a = jnp.pad(a, pads)
    return a


def _tpu_hw():
    """Best-effort (vmem_bytes_per_core, has_two_tensorcores)."""
    vmem_bytes = 128 * 2 ** 20
    multi_tc = False
    kind = ""
    try:
        kind = (jax.devices()[0].device_kind or "").lower()
    except Exception:
        pass
    if "7" in kind:                      # v7x: 64 MiB VMEM / TC, 2 TCs / chip
        vmem_bytes = 64 * 2 ** 20
        multi_tc = True
    try:                                 # prefer the real number when available
        v = getattr(pltpu.get_tpu_info(), "vmem_capacity_bytes", None)
        if v:
            vmem_bytes = int(v)
    except Exception:
        pass
    return vmem_bytes, multi_tc


# --------------------------------------------------------------------------
# Kernels
# --------------------------------------------------------------------------
def _ffn_kernel_resident(x_ref, w1_ref, b1_ref, w2_ref, b2_ref, o_ref):
    """Whole hidden dim in one shot; W1/W2/b1/b2 fully VMEM-resident."""
    pre = jnp.dot(x_ref[...], w1_ref[...], preferred_element_type=jnp.float32)
    pre = pre + b1_ref[...]                       # bias in f32
    h = pre * jax.nn.sigmoid(pre)                 # SiLU in f32 (EUP)
    out = jnp.dot(h.astype(w2_ref.dtype), w2_ref[...],
                  preferred_element_type=jnp.float32) + b2_ref[...]
    o_ref[...] = out.astype(o_ref.dtype)


def _ffn_kernel_streamed(x_ref, w1_ref, b1_ref, w2_ref, b2_ref, o_ref,
                         acc_ref, *, th):
    """Grid = (row_tiles, hidden_chunks); hidden is the reduction axis."""
    h_idx = pl.program_id(1)
    # b1 is fully resident; slice the current 128-aligned hidden chunk.
    b1_chunk = b1_ref[:, pl.ds(pl.multiple_of(h_idx * th, _LANE), th)]

    pre = jnp.dot(x_ref[...], w1_ref[...], preferred_element_type=jnp.float32)
    pre = pre + b1_chunk
    h = pre * jax.nn.sigmoid(pre)
    contrib = jnp.dot(h.astype(w2_ref.dtype), w2_ref[...],
                      preferred_element_type=jnp.float32)

    @pl.when(h_idx == 0)                 # assign on first chunk (no zero+RMW)
    def _():
        acc_ref[...] = contrib

    @pl.when(h_idx > 0)
    def _():
        acc_ref[...] += contrib

    @pl.when(h_idx == pl.num_programs(1) - 1)
    def _():
        o_ref[...] = (acc_ref[...] + b2_ref[...]).astype(o_ref.dtype)


# --------------------------------------------------------------------------
# Wrapper
# --------------------------------------------------------------------------
def feed_forward(x, w1, b1, w2, b2, *, tile_m=None, tile_h=512,
                 compute_dtype=None, force_streamed=False):
    """x: (..., in_dim); w1: (in_dim, hidden); b1: (hidden,);
       w2: (hidden, out_dim); b2: (out_dim,).

    compute_dtype: operand dtype fed to the MXU (e.g. jnp.bfloat16); f32
    accumulation, bias adds and SiLU regardless.  Default = input dtype."""
    in_dim = x.shape[-1]
    hidden = w1.shape[1]
    out_dim = w2.shape[1]
    lead = x.shape[:-1]
    out_dtype = x.dtype
    compute_dtype = compute_dtype if compute_dtype is not None else x.dtype

    x2 = x.reshape(-1, in_dim)
    M = x2.shape[0]

    # Lane-dense padded feature dims (zero padding is exact for this op).
    in_p = _round_up(in_dim, _LANE)
    hid_p = _round_up(hidden, _LANE)
    out_p = _round_up(out_dim, _LANE)

    cbytes = jnp.dtype(compute_dtype).itemsize
    obytes = jnp.dtype(out_dtype).itemsize

    vmem_bytes, multi_tc = _tpu_hw()
    budget = (vmem_bytes * 3) // 4       # leave headroom for internal scratch

    # ---- VMEM footprint models (double-buffered blocks + in-kernel temps) ----
    def _fp_resident(tm_):
        return ((2 * tm_ * in_p + 2 * in_p * hid_p + 2 * hid_p * out_p) * cbytes
                + 2 * (hid_p + out_p) * 4          # resident biases (f32)
                + 2 * tm_ * out_p * obytes          # output double buffer
                + tm_ * hid_p * (8 + cbytes)        # pre/h f32 + cast temp
                + tm_ * out_p * 4)                  # 2nd dot f32 result

    def _fp_streamed(tm_, th_):
        return ((2 * tm_ * in_p + 2 * in_p * th_ + 2 * th_ * out_p) * cbytes
                + 2 * (hid_p + out_p) * 4
                + 2 * tm_ * out_p * obytes
                + tm_ * out_p * 4                   # f32 accumulator scratch
                + tm_ * th_ * (8 + cbytes)          # pre/h f32 + cast temp
                + tm_ * out_p * 4)                  # 2nd dot f32 result

    # ---- row tile: generation-aware default, multiple of 8 sublanes ----
    if tile_m is None:
        tile_m = 1024 if vmem_bytes >= 96 * 2 ** 20 else 512
    tm = _round_up(min(tile_m, _round_up(M, _SUBLANE)), _SUBLANE)
    if multi_tc:
        # Feed both TensorCores via the "parallel" row axis, but never degrade
        # below ~256-row tiles (one healthy MXU pass per core).
        while (_round_up(M, tm) // tm) < 2 and tm >= 512:
            tm = _round_up(tm // 2, _SUBLANE)

    # ---- path choice: fully-resident weights vs streamed hidden chunks ----
    weights_resident = (not force_streamed) and _fp_resident(tm) <= budget

    if weights_resident:
        th = hid_p
        footprint = _fp_resident(tm)
    else:
        # hidden chunk: multiple of 128 that divides the padded hidden dim
        th = _round_up(min(tile_h, hid_p), _LANE)
        while hid_p % th != 0:
            th -= _LANE
        # shrink th, then tm, until the footprint fits the budget
        while _fp_streamed(tm, th) > budget and th > _LANE:
            th_new = th - _LANE
            while th_new > _LANE and hid_p % th_new != 0:
                th_new -= _LANE
            th = th_new
        while _fp_streamed(tm, th) > budget and tm > 128:
            tm = max(128, _round_up(tm // 2, _SUBLANE))
        footprint = _fp_streamed(tm, th)

    M_p = _round_up(M, tm)
    n_row_tiles = M_p // tm

    # ---- pad + cast operands (biases stay f32 for exact bias add) ----
    x_p = _pad_to(x2, (M_p, in_p)).astype(compute_dtype)
    w1_p = _pad_to(w1, (in_p, hid_p)).astype(compute_dtype)
    w2_p = _pad_to(w2, (hid_p, out_p)).astype(compute_dtype)
    b1_p = _pad_to(b1.reshape(1, -1), (1, hid_p)).astype(jnp.float32)
    b2_p = _pad_to(b2.reshape(1, -1), (1, out_p)).astype(jnp.float32)

    # ---- generation-aware VMEM limit (no double counting; keep headroom) ----
    vmem_limit = int(max(32 * 2 ** 20,
                         min(vmem_bytes - 8 * 2 ** 20,
                             footprint + footprint // 4)))

    # Weights are re-streamed once per row tile under the streamed blocking.
    weight_reads = 1 if weights_resident else n_row_tiles
    cost = pl.CostEstimate(
        flops=2 * M_p * (in_p * hid_p + hid_p * out_p),
        transcendentals=M_p * hid_p,                      # sigmoid in SiLU
        bytes_accessed=(M_p * in_p * cbytes
                        + weight_reads * (in_p * hid_p + hid_p * out_p) * cbytes
                        + (hid_p + out_p) * 4
                        + M_p * out_p * obytes))

    if weights_resident:
        out = pl.pallas_call(
            _ffn_kernel_resident,
            out_shape=jax.ShapeDtypeStruct((M_p, out_p), out_dtype),
            grid_spec=pltpu.PrefetchScalarGridSpec(
                num_scalar_prefetch=0,
                grid=(n_row_tiles,),
                in_specs=[
                    pl.BlockSpec((tm, in_p), lambda i: (i, 0)),       # x rows
                    pl.BlockSpec((in_p, hid_p), lambda i: (0, 0)),    # W1 resident
                    pl.BlockSpec((1, hid_p), lambda i: (0, 0)),       # b1 resident
                    pl.BlockSpec((hid_p, out_p), lambda i: (0, 0)),   # W2 resident
                    pl.BlockSpec((1, out_p), lambda i: (0, 0)),       # b2 resident
                ],
                out_specs=pl.BlockSpec((tm, out_p), lambda i: (i, 0)),
            ),
            compiler_params=pltpu.CompilerParams(
                dimension_semantics=("parallel",),
                vmem_limit_bytes=vmem_limit),
            cost_estimate=cost,
        )(x_p, w1_p, b1_p, w2_p, b2_p)
    else:
        out = pl.pallas_call(
            functools.partial(_ffn_kernel_streamed, th=th),
            out_shape=jax.ShapeDtypeStruct((M_p, out_p), out_dtype),
            grid_spec=pltpu.PrefetchScalarGridSpec(
                num_scalar_prefetch=0,
                grid=(n_row_tiles, hid_p // th),
                in_specs=[
                    pl.BlockSpec((tm, in_p), lambda i, h: (i, 0)),    # x rows
                    pl.BlockSpec((in_p, th), lambda i, h: (0, h)),    # W1 chunk
                    pl.BlockSpec((1, hid_p), lambda i, h: (0, 0)),    # b1 resident
                    pl.BlockSpec((th, out_p), lambda i, h: (h, 0)),   # W2 chunk
                    pl.BlockSpec((1, out_p), lambda i, h: (0, 0)),    # b2 resident
                ],
                out_specs=pl.BlockSpec((tm, out_p), lambda i, h: (i, 0)),
                scratch_shapes=[pltpu.VMEM((tm, out_p), jnp.float32)],
            ),
            compiler_params=pltpu.CompilerParams(
                dimension_semantics=("parallel", "arbitrary"),
                vmem_limit_bytes=vmem_limit),
            cost_estimate=cost,
        )(x_p, w1_p, b1_p, w2_p, b2_p)

    return out[:M, :out_dim].reshape(*lead, out_dim)


def _init_linear(key, fan_in, fan_out, dtype=jnp.float32):
    # Deterministic init mimicking torch.nn.Linear default (uniform +-1/sqrt(fan_in)).
    kw, kb = jax.random.split(key)
    bound = 1.0 / jnp.sqrt(fan_in)
    w = jax.random.uniform(kw, (fan_in, fan_out), dtype, -bound, bound)
    b = jax.random.uniform(kb, (fan_out,), dtype, -bound, bound)
    return w, b


if __name__ == "__main__":
    # FeedForward(in_dim=32, hidden_dim=64, out_dim=32, activation='silu', linear_bias=True)
    B, S, IN, HID, OUT = 2, 8, 32, 64, 32

    key = jax.random.PRNGKey(0)
    kx, k1, k2 = jax.random.split(key, 3)

    x = jax.random.normal(kx, (B, S, IN), jnp.float32)
    w1, b1 = _init_linear(k1, IN, HID)
    w2, b2 = _init_linear(k2, HID, OUT)

    # Pure-JAX reference.
    h_ref = x @ w1 + b1
    h_ref = h_ref * jax.nn.sigmoid(h_ref)
    y_ref = h_ref @ w2 + b2

    # 1) Default path (resident weights for this small FFN), exact f32.
    y = jax.block_until_ready(feed_forward(x, w1, b1, w2, b2))
    assert jnp.allclose(y, y_ref, atol=1e-5, rtol=1e-5), "f32 resident mismatch"

    # 2) Force the streamed (hidden-chunked) path to exercise the reduction axis.
    y_s = jax.block_until_ready(
        feed_forward(x, w1, b1, w2, b2, tile_h=128, force_streamed=True))
    assert jnp.allclose(y_s, y_ref, atol=1e-5, rtol=1e-5), "f32 streamed mismatch"

    # 3) Multi-chunk streamed path (padded hidden = 384 -> 3 chunks of 128).
    HID2 = 320
    w1b, b1b = _init_linear(k1, IN, HID2)
    w2b, b2b = _init_linear(k2, HID2, OUT)
    h2 = x @ w1b + b1b
    h2 = h2 * jax.nn.sigmoid(h2)
    y2_ref = h2 @ w2b + b2b
    y2 = jax.block_until_ready(
        feed_forward(x, w1b, b1b, w2b, b2b, tile_h=128, force_streamed=True))
    assert jnp.allclose(y2, y2_ref, atol=1e-5, rtol=1e-5), "multi-chunk mismatch"

    # 4) bf16 MXU path with f32 accumulation (looser check).
    y_bf16 = jax.block_until_ready(
        feed_forward(x, w1, b1, w2, b2, compute_dtype=jnp.bfloat16))
    assert jnp.allclose(y_bf16, y_ref, atol=5e-2, rtol=5e-2), "bf16 mismatch"

    print("KERNEL_OK")
</pallas_src>

<mosaic_0001>
module attributes {stable_mosaic.version = 11 : i64} {
  func.func @_ffn_kernel_resident(%arg0: i32, %arg1: memref<16x128xf32, #tpu.memory_space<vmem>>, %arg2: memref<128x128xf32, #tpu.memory_space<vmem>>, %arg3: memref<1x128xf32, #tpu.memory_space<vmem>>, %arg4: memref<128x128xf32, #tpu.memory_space<vmem>>, %arg5: memref<1x128xf32, #tpu.memory_space<vmem>>, %arg6: memref<16x128xf32, #tpu.memory_space<vmem>>) attributes {dimension_semantics = [#tpu.dimension_semantics<parallel>], iteration_bounds = array<i64: 1>, scalar_prefetch = 0 : i64, scratch_operands = 0 : i64, tpu.core_type = #tpu.core_type<tc>, window_params = [{transform_indices = @transform_0, window_bounds = array<i64: 16, 128>}, {pipeline_mode = #tpu.pipeline_mode<synchronous>, transform_indices = @transform_1, window_bounds = array<i64: 128, 128>}, {pipeline_mode = #tpu.pipeline_mode<synchronous>, transform_indices = @transform_2, window_bounds = array<i64: 1, 128>}, {pipeline_mode = #tpu.pipeline_mode<synchronous>, transform_indices = @transform_3, window_bounds = array<i64: 128, 128>}, {pipeline_mode = #tpu.pipeline_mode<synchronous>, transform_indices = @transform_4, window_bounds = array<i64: 1, 128>}, {transform_indices = @transform_5, window_bounds = array<i64: 16, 128>}]} {
    %c0 = arith.constant 0 : index
    %c0_0 = arith.constant 0 : index
    %0 = vector.load %arg1[%c0, %c0_0] : memref<16x128xf32, #tpu.memory_space<vmem>>, vector<16x128xf32>
    %c0_1 = arith.constant 0 : index
    %c0_2 = arith.constant 0 : index
    %1 = vector.load %arg2[%c0_1, %c0_2] : memref<128x128xf32, #tpu.memory_space<vmem>>, vector<128x128xf32>
    %cst = arith.constant dense<0.000000e+00> : vector<16x128xf32>
    %2 = tpu.matmul %0, %1, %cst {dimension_numbers = #tpu.dot_dimension_numbers<[1], [0], [0], [1], [0, 0, 1, 1], [], []>} : vector<16x128xf32>, vector<128x128xf32>, vector<16x128xf32> -> vector<16x128xf32>
    %c0_3 = arith.constant 0 : index
    %c0_4 = arith.constant 0 : index
    %3 = vector.load %arg3[%c0_3, %c0_4] : memref<1x128xf32, #tpu.memory_space<vmem>>, vector<1x128xf32>
    %4 = vector.broadcast %3 : vector<1x128xf32> to vector<16x128xf32>
    %5 = arith.addf %2, %4 : vector<16x128xf32>
    %6 = arith.negf %5 : vector<16x128xf32>
    %7 = math.exp %6 : vector<16x128xf32>
    %cst_5 = arith.constant 1.000000e+00 : f32
    %8 = vector.broadcast %cst_5 : f32 to vector<16x128xf32>
    %9 = arith.addf %8, %7 : vector<16x128xf32>
    %10 = arith.divf %8, %9 : vector<16x128xf32>
    %11 = arith.mulf %5, %10 : vector<16x128xf32>
    %c0_6 = arith.constant 0 : index
    %c0_7 = arith.constant 0 : index
    %12 = vector.load %arg4[%c0_6, %c0_7] : memref<128x128xf32, #tpu.memory_space<vmem>>, vector<128x128xf32>
    %cst_8 = arith.constant dense<0.000000e+00> : vector<16x128xf32>
    %13 = tpu.matmul %11, %12, %cst_8 {dimension_numbers = #tpu.dot_dimension_numbers<[1], [0], [0], [1], [0, 0, 1, 1], [], []>} : vector<16x128xf32>, vector<128x128xf32>, vector<16x128xf32> -> vector<16x128xf32>
    %c0_9 = arith.constant 0 : index
    %c0_10 = arith.constant 0 : index
    %14 = vector.load %arg5[%c0_9, %c0_10] : memref<1x128xf32, #tpu.memory_space<vmem>>, vector<1x128xf32>
    %15 = vector.broadcast %14 : vector<1x128xf32> to vector<16x128xf32>
    %16 = arith.addf %13, %15 : vector<16x128xf32>
    %c0_11 = arith.constant 0 : index
    %c0_12 = arith.constant 0 : index
    %17 = vector.load %arg6[%c0_11, %c0_12] : memref<16x128xf32, #tpu.memory_space<vmem>>, vector<16x128xf32>
    tpu.vector_store %arg6[%c0_11, %c0_12], %16 {strides = array<i32>} : memref<16x128xf32, #tpu.memory_space<vmem>>, vector<16x128xf32>,
    return
  }
  func.func @transform_0(%arg0: i32) -> (i32, i32) {
    %c0_i32 = arith.constant 0 : i32
    %c0_i32_0 = arith.constant 0 : i32
    return %arg0, %c0_i32 : i32, i32
  }
  func.func @transform_1(%arg0: i32) -> (i32, i32) {
    %c0_i32 = arith.constant 0 : i32
    %c0_i32_0 = arith.constant 0 : i32
    %c0_i32_1 = arith.constant 0 : i32
    return %c0_i32, %c0_i32_0 : i32, i32
  }
  func.func @transform_2(%arg0: i32) -> (i32, i32) {
    %c0_i32 = arith.constant 0 : i32
    %c0_i32_0 = arith.constant 0 : i32
    %c0_i32_1 = arith.constant 0 : i32
    return %c0_i32, %c0_i32_0 : i32, i32
  }
  func.func @transform_3(%arg0: i32) -> (i32, i32) {
    %c0_i32 = arith.constant 0 : i32
    %c0_i32_0 = arith.constant 0 : i32
    %c0_i32_1 = arith.constant 0 : i32
    return %c0_i32, %c0_i32_0 : i32, i32
  }
  func.func @transform_4(%arg0: i32) -> (i32, i32) {
    %c0_i32 = arith.constant 0 : i32
    %c0_i32_0 = arith.constant 0 : i32
    %c0_i32_1 = arith.constant 0 : i32
    return %c0_i32, %c0_i32_0 : i32, i32
  }
  func.func @transform_5(%arg0: i32) -> (i32, i32) {
    %c0_i32 = arith.constant 0 : i32
    %c0_i32_0 = arith.constant 0 : i32
    return %arg0, %c0_i32 : i32, i32
  }
}

</mosaic_0001>

<llo_original>
// kernel: tpu_custom_call.1
$region0: #{tpu_custom_call.1}
  #allocation0 [shape = 'u32[]', space=smem, size = 0x4, offset = 0x4, fixed_abs, tag = 'smem constant byte address 0x4 - core index']
  #allocation1 [shape = 'u32[144,128]{1,0:T(1,128)}', space=vmem, size = 0x12000, scoped, tag = 'internal scratch']
  %s0 = inlined_call_operand.hbm [shape: f32[16,128], index: 0, kind: input, shape index: {}]
  %s1 = inlined_call_operand.hbm [shape: f32[128,128], index: 1, kind: input, shape index: {}]
  %s2 = inlined_call_operand.vmem [shape: f32[1,128], index: 2, kind: input, shape index: {}]
  %s3 = inlined_call_operand.hbm [shape: f32[128,128], index: 3, kind: input, shape index: {}]
  %s4 = inlined_call_operand.vmem [shape: f32[1,128], index: 4, kind: input, shape index: {}]
  %s5 = inlined_call_operand.hbm [shape: f32[16,128], index: 5, kind: output, shape index: {}]
  %s6 = sld [smem:[#allocation0]]
  $region42: #{tpu_custom_call.1} parent=0
    _
  %s8 = ssub.s32 1, %s6
  %s9 = scalar_select 0, %s8, %s6
  $region1: #{tpu_custom_call.1} parent=0
    #allocation2 [shape = 'u8[8192]{0}', space=vmem, size = 0x2000, scoped, tag = 'input window, operand 0, single buffered']
    #allocation3 [shape = 's32[1]{0}', space=sflag, size = 0x4, scoped, tag = 'scoped memory for tpu_custom_call.1']
    #allocation4 [shape = 's32[1]{0}', space=sflag, size = 0x4, scoped, tag = 'scoped memory for tpu_custom_call.1']
    #allocation5 [shape = 'u8[65536]{0}', space=vmem, size = 0x10000, scoped, tag = 'input window, operand 1, single buffered']
    #allocation6 [shape = 's32[1]{0}', space=sflag, size = 0x4, scoped, tag = 'scoped memory for tpu_custom_call.1']
    #allocation7 [shape = 'u8[65536]{0}', space=vmem, size = 0x10000, scoped, tag = 'input window, operand 3, single buffered']
    #allocation8 [shape = 'u8[8192]{0}', space=vmem, size = 0x2000, scoped, tag = 'output window, operand 0, single buffered']
    %10 = vsyncpa [#allocation3], 0
    %11 = vsyncpa [#allocation6], 0
    %12 = vsyncpa [#allocation4], 0
    // Predicated region
    $region2: #{tpu_custom_call.1} parent=1 // pred_check
      _
    $region3: #{tpu_custom_call.1} parent=1 // pred_check_branch
      %14 = sbr.rel (0) target = $region5
    $region4: #{tpu_custom_call.1} parent=1 // pred_region
      %s16 = ssub.s32 256, 256
      %17 = vsyncadd [#allocation3], %s16
      %s18 = sshll.u32 [#allocation2], 4
      %s19 = int_to_ptr.vmem [resolvable:$true] %s18
      %24 = dma.hbm_to_vmem [thread:$0]  %s0, 256, %s19, [#allocation3], 128, 128, 8
    $region5: #{tpu_custom_call.1} parent=1 // pred_fallthru
      _
    // Predicated region
    $region6: #{tpu_custom_call.1} parent=1 // pred_check
      _
    $region7: #{tpu_custom_call.1} parent=1 // pred_check_branch
      %26 = sbr.rel (0) target = $region9
    $region8: #{tpu_custom_call.1} parent=1 // pred_region
      %s28 = ssub.s32 2048, 2048
      %29 = vsyncadd [#allocation6], %s28
      %s30 = sshll.u32 [#allocation5], 4
      %s31 = int_to_ptr.vmem [resolvable:$true] %s30
      %36 = dma.hbm_to_vmem [thread:$0]  %s1, 2048, %s31, [#allocation6], 128, 128, 8
    $region9: #{tpu_custom_call.1} parent=1 // pred_fallthru
      _
    // Predicated region
    $region10: #{tpu_custom_call.1} parent=1 // pred_check
      _
    $region11: #{tpu_custom_call.1} parent=1 // pred_check_branch
      %38 = sbr.rel (0) target = $region13
    $region12: #{tpu_custom_call.1} parent=1 // pred_region
      _
    $region13: #{tpu_custom_call.1} parent=1 // pred_fallthru
      _
    // Predicated region
    $region14: #{tpu_custom_call.1} parent=1 // pred_check
      _
    $region15: #{tpu_custom_call.1} parent=1 // pred_check_branch
      %40 = sbr.rel (0) target = $region17
    $region16: #{tpu_custom_call.1} parent=1 // pred_region
      %s42 = ssub.s32 2048, 2048
      %43 = vsyncadd [#allocation6], %s42
      %s44 = sshll.u32 [#allocation7], 4
      %s45 = int_to_ptr.vmem [resolvable:$true] %s44
      %50 = dma.hbm_to_vmem [thread:$0]  %s3, 2048, %s45, [#allocation6], 128, 128, 8
    $region17: #{tpu_custom_call.1} parent=1 // pred_fallthru
      _
    // Predicated region
    $region18: #{tpu_custom_call.1} parent=1 // pred_check
      _
    $region19: #{tpu_custom_call.1} parent=1 // pred_check_branch
      %52 = sbr.rel (0) target = $region21
    $region20: #{tpu_custom_call.1} parent=1 // pred_region
      _
    $region21: #{tpu_custom_call.1} parent=1 // pred_fallthru
      _
    // Predicated region
    $region22: #{tpu_custom_call.1} parent=1 // pred_check
      _
    $region23: #{tpu_custom_call.1} parent=1 // pred_check_branch
      %54 = sbr.rel (0) target = $region25
    $region24: #{tpu_custom_call.1} parent=1 // pred_region
      %55 = dma.done [#allocation3], 256
    $region25: #{tpu_custom_call.1} parent=1 // pred_fallthru
      _
    // Predicated region
    $region26: #{tpu_custom_call.1} parent=1 // pred_check
      _
    $region27: #{tpu_custom_call.1} parent=1 // pred_check_branch
      %57 = sbr.rel (0) target = $region29
    $region28: #{tpu_custom_call.1} parent=1 // pred_region
      %58 = dma.done [#allocation6], 2048
    $region29: #{tpu_custom_call.1} parent=1 // pred_fallthru
      _
    // Predicated region
    $region30: #{tpu_custom_call.1} parent=1 // pred_check
      _
    $region31: #{tpu_custom_call.1} parent=1 // pred_check_branch
      %60 = sbr.rel (0) target = $region33
    $region32: #{tpu_custom_call.1} parent=1 // pred_region
      %61 = dma.done [#allocation6], 2048
    $region33: #{tpu_custom_call.1} parent=1 // pred_fallthru
      _
    %v62 = vld [vmem:[#allocation2] sm:$0xff]
    %v63 = vld [vmem:[#allocation2 + $0x8] sm:$0xff]
    %v64 = vld [vmem:[#allocation5] sm:$0xff]
    %v65 = vld [vmem:[#allocation5 + $0x8] sm:$0xff]
    %v66 = vld [vmem:[#allocation5 + $0x10] sm:$0xff]
    %v67 = vld [vmem:[#allocation5 + $0x18] sm:$0xff]
    %v68 = vld [vmem:[#allocation5 + $0x20] sm:$0xff]
    %v69 = vld [vmem:[#allocation5 + $0x28] sm:$0xff]
    %v70 = vld [vmem:[#allocation5 + $0x30] sm:$0xff]
    %v71 = vld [vmem:[#allocation5 + $0x38] sm:$0xff]
    %v72 = vld [vmem:[#allocation5 + $0x40] sm:$0xff]
    %v73 = vld [vmem:[#allocation5 + $0x48] sm:$0xff]
    %v74 = vld [vmem:[#allocation5 + $0x50] sm:$0xff]
    %v75 = vld [vmem:[#allocation5 + $0x58] sm:$0xff]
    %v76 = vld [vmem:[#allocation5 + $0x60] sm:$0xff]
    %v77 = vld [vmem:[#allocation5 + $0x68] sm:$0xff]
    %v78 = vld [vmem:[#allocation5 + $0x70] sm:$0xff]
    %v79 = vld [vmem:[#allocation5 + $0x78] sm:$0xff]
    %v80 = vld [vmem:[%s2] sm:$0x1]
    %v82 = vlaneseq
    %v83 = vshrl.u32 %v82, 7
    %v84 = vsub.s32 0, %v83
    %v85 = vrot.slane %v80, %v84
    %87 = vmatprep.subr.mxu0 0.0
    %88 = vmatpush1.msra.mxu0 %v79
    %89 = vmatprep.subr.mxu0 0.0
    %90 = vmatpush1.msra.mxu0 %v78
    %91 = vmatprep.subr.mxu0 0.0
    %92 = vmatpush1.msra.mxu0 %v77
    %93 = vmatprep.subr.mxu0 0.0
    %94 = vmatpush1.msra.mxu0 %v76
    %95 = vmatprep.subr.mxu0 0.0
    %96 = vmatpush1.msra.mxu0 %v75
    %97 = vmatprep.subr.mxu0 0.0
    %98 = vmatpush1.msra.mxu0 %v74
    %99 = vmatprep.subr.mxu0 0.0
    %100 = vmatpush1.msra.mxu0 %v73
    %101 = vmatprep.subr.mxu0 0.0
    %102 = vmatpush1.msra.mxu0 %v72
    %103 = vmatprep.subr.mxu0 0.0
    %104 = vmatpush1.msra.mxu0 %v71
    %105 = vmatprep.subr.mxu0 0.0
    %106 = vmatpush1.msra.mxu0 %v70
    %107 = vmatprep.subr.mxu0 0.0
    %108 = vmatpush1.msra.mxu0 %v69
    %109 = vmatprep.subr.mxu0 0.0
    %110 = vmatpush1.msra.mxu0 %v68
    %111 = vmatprep.subr.mxu0 0.0
    %112 = vmatpush1.msra.mxu0 %v67
    %113 = vmatprep.subr.mxu0 0.0
    %114 = vmatpush1.msra.mxu0 %v66
    %115 = vmatprep.subr.mxu0 0.0
    %116 = vmatpush1.msra.mxu0 %v65
    %117 = vmatprep.subr.mxu0 0.0
    %118 = vmatpush1.msra.mxu0 %v64
    %119 = vmatprep.subr.mxu0 0.0
    %120 = vmatpush2.msra.mxu0 0.0
    %121 = vmatprep.subr.mxu0 0.0
    %122 = vmatpush2.msra.mxu0 0.0
    %123 = vmatprep.subr.mxu0 0.0
    %124 = vmatpush2.msra.mxu0 0.0
    %125 = vmatprep.subr.mxu0 0.0
    %126 = vmatpush2.msra.mxu0 0.0
    %127 = vmatprep.subr.mxu0 0.0
    %128 = vmatpush2.msra.mxu0 0.0
    %129 = vmatprep.subr.mxu0 0.0
    %130 = vmatpush2.msra.mxu0 0.0
    %131 = vmatprep.subr.mxu0 0.0
    %132 = vmatpush2.msra.mxu0 0.0
    %133 = vmatprep.subr.mxu0 0.0
    %134 = vmatpush2.msra.mxu0 0.0
    %135 = vmatprep.subr.mxu0 0.0
    %136 = vmatpush2.msra.mxu0 0.0
    %137 = vmatprep.subr.mxu0 0.0
    %138 = vmatpush2.msra.mxu0 0.0
    %139 = vmatprep.subr.mxu0 0.0
    %140 = vmatpush2.msra.mxu0 0.0
    %141 = vmatprep.subr.mxu0 0.0
    %142 = vmatpush2.msra.mxu0 0.0
    %143 = vmatprep.subr.mxu0 0.0
    %144 = vmatpush2.msra.mxu0 0.0
    %145 = vmatprep.subr.mxu0 0.0
    %146 = vmatpush2.msra.mxu0 0.0
    %147 = vmatprep.subr.mxu0 0.0
    %148 = vmatpush2.msra.mxu0 0.0
    %149 = vmatprep.subr.mxu0 0.0
    %150 = vmatpush2.msra.mxu0 0.0
    %151 = vmatprep.mubr.f32.mxu0 0.0
    %152 = vmatmul.mubr.f32.gmra.mxu0 %v62
    %v153 = vpop.f32.mrf.mxu0
    %v154 = vadd.f32 %v85, %v153
    %v155 = vpop.f32.mrf.mxu0
    %156 = vmatprep.mubr.f32.mxu0 0.0
    %157 = vmatmul.mubr.f32.gmra.mxu0 %v63
    %v158 = vpop.f32.mrf.mxu0
    %v159 = vadd.f32 %v85, %v158
    %v160 = vpop.f32.mrf.mxu0
    %161 = vdwg.mxu0
    %v162 = vxor.u32 %v154, 2147483648
    %v163 = vxor.u32 %v159, 2147483648
    %v164 = vmul.f32 %v162, 1.442695
    %v165 = vpow.pop %v164
    %v166 = vmul.f32 %v163, 1.442695
    %v167 = vpow.pop %v166
    %v168 = vadd.f32 %v165, 1.0
    %v169 = vadd.f32 %v167, 1.0
    %v170 = vrcp.pop %v168
    %v171 = vmul.f32 1.0, %v170
    %v172 = vrcp.pop %v169
    %v173 = vmul.f32 1.0, %v172
    %v174 = vmul.f32 %v154, %v171
    %v175 = vmul.f32 %v159, %v173
    %v176 = vld [vmem:[#allocation7] sm:$0xff]
    %v177 = vld [vmem:[#allocation7 + $0x8] sm:$0xff]
    %v178 = vld [vmem:[#allocation7 + $0x10] sm:$0xff]
    %v179 = vld [vmem:[#allocation7 + $0x18] sm:$0xff]
    %v180 = vld [vmem:[#allocation7 + $0x20] sm:$0xff]
    %v181 = vld [vmem:[#allocation7 + $0x28] sm:$0xff]
    %v182 = vld [vmem:[#allocation7 + $0x30] sm:$0xff]
    %v183 = vld [vmem:[#allocation7 + $0x38] sm:$0xff]
    %v184 = vld [vmem:[#allocation7 + $0x40] sm:$0xff]
    %v185 = vld [vmem:[#allocation7 + $0x48] sm:$0xff]
    %v186 = vld [vmem:[#allocation7 + $0x50] sm:$0xff]
    %v187 = vld [vmem:[#allocation7 + $0x58] sm:$0xff]
    %v188 = vld [vmem:[#allocation7 + $0x60] sm:$0xff]
    %v189 = vld [vmem:[#allocation7 + $0x68] sm:$0xff]
    %v190 = vld [vmem:[#allocation7 + $0x70] sm:$0xff]
    %v191 = vld [vmem:[#allocation7 + $0x78] sm:$0xff]
    %v192 = vld [vmem:[%s4] sm:$0x1]
    %v194 = vlaneseq
    %v195 = vshrl.u32 %v194, 7
    %v196 = vsub.s32 0, %v195
    %v197 = vrot.slane %v192, %v196
    %199 = vmatprep.subr.mxu0 0.0
    %200 = vmatpush1.msra.mxu0 %v191
    %201 = vmatprep.subr.mxu0 0.0
    %202 = vmatpush1.msra.mxu0 %v190
    %203 = vmatprep.subr.mxu0 0.0
    %204 = vmatpush1.msra.mxu0 %v189
    %205 = vmatprep.subr.mxu0 0.0
    %206 = vmatpush1.msra.mxu0 %v188
    %207 = vmatprep.subr.mxu0 0.0
    %208 = vmatpush1.msra.mxu0 %v187
    %209 = vmatprep.subr.mxu0 0.0
    %210 = vmatpush1.msra.mxu0 %v186
    %211 = vmatprep.subr.mxu0 0.0
    %212 = vmatpush1.msra.mxu0 %v185
    %213 = vmatprep.subr.mxu0 0.0
    %214 = vmatpush1.msra.mxu0 %v184
    %215 = vmatprep.subr.mxu0 0.0
    %216 = vmatpush1.msra.mxu0 %v183
    %217 = vmatprep.subr.mxu0 0.0
    %218 = vmatpush1.msra.mxu0 %v182
    %219 = vmatprep.subr.mxu0 0.0
    %220 = vmatpush1.msra.mxu0 %v181
    %221 = vmatprep.subr.mxu0 0.0
    %222 = vmatpush1.msra.mxu0 %v180
    %223 = vmatprep.subr.mxu0 0.0
    %224 = vmatpush1.msra.mxu0 %v179
    %225 = vmatprep.subr.mxu0 0.0
    %226 = vmatpush1.msra.mxu0 %v178
    %227 = vmatprep.subr.mxu0 0.0
    %228 = vmatpush1.msra.mxu0 %v177
    %229 = vmatprep.subr.mxu0 0.0
    %230 = vmatpush1.msra.mxu0 %v176
    %231 = vmatprep.subr.mxu0 0.0
    %232 = vmatpush2.msra.mxu0 0.0
    %233 = vmatprep.subr.mxu0 0.0
    %234 = vmatpush2.msra.mxu0 0.0
    %235 = vmatprep.subr.mxu0 0.0
    %236 = vmatpush2.msra.mxu0 0.0
    %237 = vmatprep.subr.mxu0 0.0
    %238 = vmatpush2.msra.mxu0 0.0
    %239 = vmatprep.subr.mxu0 0.0
    %240 = vmatpush2.msra.mxu0 0.0
    %241 = vmatprep.subr.mxu0 0.0
    %242 = vmatpush2.msra.mxu0 0.0
    %243 = vmatprep.subr.mxu0 0.0
    %244 = vmatpush2.msra.mxu0 0.0
    %245 = vmatprep.subr.mxu0 0.0
    %246 = vmatpush2.msra.mxu0 0.0
    %247 = vmatprep.subr.mxu0 0.0
    %248 = vmatpush2.msra.mxu0 0.0
    %249 = vmatprep.subr.mxu0 0.0
    %250 = vmatpush2.msra.mxu0 0.0
    %251 = vmatprep.subr.mxu0 0.0
    %252 = vmatpush2.msra.mxu0 0.0
    %253 = vmatprep.subr.mxu0 0.0
    %254 = vmatpush2.msra.mxu0 0.0
    %255 = vmatprep.subr.mxu0 0.0
    %256 = vmatpush2.msra.mxu0 0.0
    %257 = vmatprep.subr.mxu0 0.0
    %258 = vmatpush2.msra.mxu0 0.0
    %259 = vmatprep.subr.mxu0 0.0
    %260 = vmatpush2.msra.mxu0 0.0
    %261 = vmatprep.subr.mxu0 0.0
    %262 = vmatpush2.msra.mxu0 0.0
    %263 = vmatprep.mubr.f32.mxu0 0.0
    %264 = vmatmul.mubr.f32.gmra.mxu0 %v174
    %v265 = vpop.f32.mrf.mxu0
    %v266 = vadd.f32 %v197, %v265
    %v267 = vpop.f32.mrf.mxu0
    %268 = vmatprep.mubr.f32.mxu0 0.0
    %269 = vmatmul.mubr.f32.gmra.mxu0 %v175
    %v270 = vpop.f32.mrf.mxu0
    %v271 = vadd.f32 %v197, %v270
    %v272 = vpop.f32.mrf.mxu0
    %273 = vdwg.mxu0
    %274 = vst [vmem:[#allocation8] sm:$0xff] %v266
    %275 = vst [vmem:[#allocation8 + $0x8] sm:$0xff] %v271
    // Predicated region
    $region34: #{tpu_custom_call.1} parent=1 // pred_check
      _
    $region35: #{tpu_custom_call.1} parent=1 // pred_check_branch
      %277 = sbr.rel (0) target = $region37
    $region36: #{tpu_custom_call.1} parent=1 // pred_region
      %s279 = ssub.s32 256, 256
      %280 = vsyncadd [#allocation4], %s279
      %s281 = sshll.u32 [#allocation8], 4
      %s282 = int_to_ptr.vmem [resolvable:$true] %s281
      %287 = dma.vmem_to_hbm [thread:$0]  %s282, 256, %s5, [#allocation4], 128, 128, 8
    $region37: #{tpu_custom_call.1} parent=1 // pred_fallthru
      _
    // Predicated region
    $region38: #{tpu_custom_call.1} parent=1 // pred_check
      _
    $region39: #{tpu_custom_call.1} parent=1 // pred_check_branch
      %289 = sbr.rel (0) target = $region41
    $region40: #{tpu_custom_call.1} parent=1 // pred_region
      %290 = dma.done [#allocation4], 256
    $region41: #{tpu_custom_call.1} parent=1 // pred_fallthru
      _
    %291 = vsyncpa [#allocation3], 1
    %292 = vsyncpa [#allocation6], 1
    %293 = vsyncpa [#allocation4], 1

</llo_original>
